<compile_context>
chip_gen: v6e
topology: v6e:2x2x1
jax: 0.10.0
libtpu: 0.0.40
codegen_flags: <defaults>
</compile_context>

<pallas_src>
import functools

import jax
import jax.numpy as jnp
from jax.experimental import pallas as pl
from jax.experimental.pallas import tpu as pltpu


def item_tower_kernel(x_ref, w1_ref, b1_ref, w2_ref, b2_ref, o_ref):
    # fc1: (tile, 2E) @ W1.T (2E, H), f32 accumulation on the MXU.
    h = jnp.dot(x_ref[...], w1_ref[...], preferred_element_type=jnp.float32)
    h = jnp.maximum(h + b1_ref[...], 0.0)
    # fc2: cast back to the streaming dtype so the second matmul also takes the
    # (bf16) MXU path; accumulate in f32, bias + ReLU in f32.
    h = h.astype(w2_ref.dtype)
    y = jnp.dot(h, w2_ref[...], preferred_element_type=jnp.float32) + b2_ref[...]
    o_ref[...] = jnp.maximum(y, 0.0).astype(o_ref.dtype)


def _round_up(x, m):
    return ((x + m - 1) // m) * m


def _num_tensorcores():
    """Best-effort megacore detection (v7x has 2 TensorCores per chip)."""
    try:
        kind = jax.devices()[0].device_kind.lower()
    except Exception:  # pragma: no cover
        return 1
    return 2 if ("v7" in kind or "7x" in kind) else 1


def _maybe_squeeze(ids):
    # Mirror the PyTorch module's `.squeeze()` for >2-D ids, but never drop
    # below 2-D (so (1, S, 1) keeps its batch dim instead of collapsing to 1-D).
    if ids.ndim > 2:
        for ax in reversed(range(ids.ndim)):
            if ids.ndim <= 2:
                break
            if ids.shape[ax] == 1:
                ids = jnp.squeeze(ids, axis=ax)
    assert ids.ndim == 2, f"expected 2-D ids after squeeze, got {ids.shape}"
    return ids


def prepare_params(raw, *, stream_dtype=jnp.bfloat16):
    """One-time re-layout: tables pre-cast, weights pre-transposed + pre-cast.

    Doing this once (outside the jitted forward) removes a per-call
    transpose+cast kernel and halves the gather's table-read bytes for bf16.
    """
    H = raw["fc1_w"].shape[0]
    return {
        "item_embedding": raw["item_embedding"].astype(stream_dtype),      # (V, E)
        "category_embedding": raw["category_embedding"].astype(stream_dtype),
        "w1_t": raw["fc1_w"].T.astype(stream_dtype),                       # (2E, H)
        "b1": raw["fc1_b"].reshape(1, H).astype(jnp.float32),              # (1, H)
        "w2_t": raw["fc2_w"].T.astype(stream_dtype),                       # (H, H)
        "b2": raw["fc2_b"].reshape(1, H).astype(jnp.float32),              # (1, H)
    }


@functools.partial(jax.jit, static_argnames=("row_tile", "out_dtype"))
def item_tower_forward(item_ids, category_ids, params, *,
                       row_tile=4096, out_dtype=jnp.bfloat16):
    """Forward pass matching the PyTorch ItemTower.forward semantics.

    `params` must come from prepare_params (pre-transposed / pre-cast).
    """
    item_tbl = params["item_embedding"]   # (V, E) stream_dtype
    cat_tbl = params["category_embedding"]
    w1_t = params["w1_t"]                 # (2E, H)
    b1 = params["b1"]                     # (1, H) f32
    w2_t = params["w2_t"]                 # (H, H)
    b2 = params["b2"]                     # (1, H) f32

    item_ids = _maybe_squeeze(item_ids)
    category_ids = _maybe_squeeze(category_ids)

    bsz, seq_len = item_ids.shape
    n_rows = bsz * seq_len
    E = item_tbl.shape[1]
    two_e = 2 * E
    H = w1_t.shape[1]

    # --- row tile (static): big tiles amortize the ~0.35 us/step pipeline
    # overhead; split for >= 2 grid iterations only on megacore (v7x). ---
    tile = min(row_tile, _round_up(n_rows, 16))
    tile = max(16, _round_up(tile, 16))
    n_padded = _round_up(n_rows, tile)
    if _num_tensorcores() >= 2 and (n_padded // tile) < 2 and tile > 16:
        tile = max(16, _round_up(tile // 2, 16))
        n_padded = _round_up(n_rows, tile)
    pad = n_padded - n_rows

    # --- glue: pad the cheap int32 ids (not the (N, 2E) activations), then
    # gather from the already-stream-dtype tables and concat once. ---
    item_flat = item_ids.reshape(-1)
    cat_flat = category_ids.reshape(-1)
    if pad:
        item_flat = jnp.pad(item_flat, (0, pad))   # id 0 -> harmless, sliced off
        cat_flat = jnp.pad(cat_flat, (0, pad))

    # TODO(synk): in-kernel VMEM-resident gather (PrefetchScalarGridSpec ids)
    # to remove this HBM intermediate; needs bf16 tables on v7x (64 MiB VMEM).
    item_emb = jnp.take(item_tbl, item_flat, axis=0)                 # (Np, E)
    cat_emb = jnp.take(cat_tbl, cat_flat, axis=0)                    # (Np, E)
    combined = jnp.concatenate([item_emb, cat_emb], axis=-1)         # (Np, 2E)

    grid = (n_padded // tile,)

    # VMEM estimate: double-buffered input/output tiles + resident weights.
    in_b = combined.dtype.itemsize
    out_b = jnp.dtype(out_dtype).itemsize
    w_b = w1_t.dtype.itemsize
    est = (2 * tile * two_e * in_b + 2 * tile * H * out_b
           + (two_e * H + H * H) * w_b + 2 * H * 4)
    # Only raise the scoped limit when we'd exceed v5e's 16 MiB default.
    vmem_limit = int(min(60 * 2**20, 2 * est)) if est > 12 * 2**20 else None

    out = pl.pallas_call(
        item_tower_kernel,
        out_shape=jax.ShapeDtypeStruct((n_padded, H), out_dtype),
        grid_spec=pl.GridSpec(
            grid=grid,
            in_specs=[
                pl.BlockSpec((tile, two_e), lambda i: (i, 0)),   # streamed rows
                pl.BlockSpec((two_e, H), lambda i: (0, 0)),      # W1.T (resident)
                pl.BlockSpec((1, H), lambda i: (0, 0)),          # b1   (resident)
                pl.BlockSpec((H, H), lambda i: (0, 0)),          # W2.T (resident)
                pl.BlockSpec((1, H), lambda i: (0, 0)),          # b2   (resident)
            ],
            out_specs=pl.BlockSpec((tile, H), lambda i: (i, 0)),
        ),
        compiler_params=pltpu.CompilerParams(
            dimension_semantics=("parallel",),
            vmem_limit_bytes=vmem_limit),
    )(combined, w1_t, b1, w2_t, b2)

    out = out[:n_rows]
    return out.reshape(bsz, seq_len, H)


def init_params(key, embedding_dim, hidden_dim, vocab_size):
    """Deterministic synthetic parameters (shapes match the PyTorch module)."""
    k = jax.random.split(key, 6)
    # nn.Embedding default: N(0, 1)
    item_embedding = jax.random.normal(k[0], (vocab_size, embedding_dim), jnp.float32)
    category_embedding = jax.random.normal(k[1], (vocab_size, embedding_dim), jnp.float32)
    # nn.Linear default: U(-1/sqrt(fan_in), 1/sqrt(fan_in))
    lim1 = 1.0 / jnp.sqrt(2.0 * embedding_dim)
    fc1_w = jax.random.uniform(k[2], (hidden_dim, 2 * embedding_dim),
                               jnp.float32, -lim1, lim1)
    fc1_b = jax.random.uniform(k[3], (hidden_dim,), jnp.float32, -lim1, lim1)
    lim2 = 1.0 / jnp.sqrt(float(hidden_dim))
    fc2_w = jax.random.uniform(k[4], (hidden_dim, hidden_dim),
                               jnp.float32, -lim2, lim2)
    fc2_b = jax.random.uniform(k[5], (hidden_dim,), jnp.float32, -lim2, lim2)
    return {
        "item_embedding": item_embedding,
        "category_embedding": category_embedding,
        "fc1_w": fc1_w, "fc1_b": fc1_b,
        "fc2_w": fc2_w, "fc2_b": fc2_b,
    }


def reference_forward(item_ids, category_ids, params):
    """Pure-JAX f32 reference matching the PyTorch forward."""
    bsz, seq_len = item_ids.shape
    item_emb = jnp.take(params["item_embedding"], item_ids.reshape(-1), axis=0)
    cat_emb = jnp.take(params["category_embedding"], category_ids.reshape(-1), axis=0)
    combined = jnp.concatenate([item_emb, cat_emb], axis=-1)
    x = jax.nn.relu(combined @ params["fc1_w"].T + params["fc1_b"])
    x = jax.nn.relu(x @ params["fc2_w"].T + params["fc2_b"])
    return x.reshape(bsz, seq_len, -1)


if __name__ == "__main__":
    # Small shapes consistent with the module (ids: (batch, seq_len) int32).
    embedding_dim = 64
    hidden_dim = 128
    vocab_size = 512      # small synthetic vocab (module default 100001 -> same semantics)
    batch = 2
    seq_len = 8

    key = jax.random.PRNGKey(0)
    k_param, k_item, k_cat = jax.random.split(key, 3)

    params = init_params(k_param, embedding_dim, hidden_dim, vocab_size)
    item_ids = jax.random.randint(k_item, (batch, seq_len), 0, vocab_size, jnp.int32)
    category_ids = jax.random.randint(k_cat, (batch, seq_len), 0, vocab_size, jnp.int32)

    ref = reference_forward(item_ids, category_ids, params)

    # f32 streaming + f32 output: tight parity with the reference.
    prep_f32 = prepare_params(params, stream_dtype=jnp.float32)
    out_f32 = item_tower_forward(item_ids, category_ids, prep_f32,
                                 out_dtype=jnp.float32)
    out_f32 = jax.block_until_ready(out_f32)
    assert out_f32.shape == (batch, seq_len, hidden_dim), out_f32.shape
    assert jnp.allclose(out_f32, ref, atol=1e-5, rtol=1e-5), "f32 mismatch vs reference"

    # Default perf path: bf16 streaming + bf16 output (kernel is memory-bound);
    # loose tolerance because inputs/weights/output are bf16 (f32 accumulate).
    prep_bf16 = prepare_params(params)
    out_bf16 = item_tower_forward(item_ids, category_ids, prep_bf16)
    out_bf16 = jax.block_until_ready(out_bf16)
    assert out_bf16.shape == (batch, seq_len, hidden_dim), out_bf16.shape
    assert out_bf16.dtype == jnp.bfloat16, out_bf16.dtype
    assert jnp.allclose(out_bf16.astype(jnp.float32), ref, atol=4e-2, rtol=4e-2), \
        "bf16 mismatch vs reference"

    # >2-D ids path: trailing size-1 dims squeezed (mirrors torch `.squeeze()`).
    out_3d = item_tower_forward(item_ids[..., None], category_ids[..., None],
                                prep_f32, out_dtype=jnp.float32)
    out_3d = jax.block_until_ready(out_3d)
    assert jnp.allclose(out_3d, ref, atol=1e-5, rtol=1e-5), "3-D-ids mismatch"

    print("KERNEL_OK")
</pallas_src>

<mosaic_0001>
module attributes {stable_mosaic.version = 11 : i64} {
  func.func @item_tower_kernel(%arg0: i32, %arg1: memref<16x128xf32, #tpu.memory_space<vmem>>, %arg2: memref<128x128xf32, #tpu.memory_space<vmem>>, %arg3: memref<1x128xf32, #tpu.memory_space<vmem>>, %arg4: memref<128x128xf32, #tpu.memory_space<vmem>>, %arg5: memref<1x128xf32, #tpu.memory_space<vmem>>, %arg6: memref<16x128xf32, #tpu.memory_space<vmem>>) attributes {dimension_semantics = [#tpu.dimension_semantics<parallel>], iteration_bounds = array<i64: 1>, scalar_prefetch = 0 : i64, scratch_operands = 0 : i64, tpu.core_type = #tpu.core_type<tc>, window_params = [{transform_indices = @transform_0, window_bounds = array<i64: 16, 128>}, {pipeline_mode = #tpu.pipeline_mode<synchronous>, transform_indices = @transform_1, window_bounds = array<i64: 128, 128>}, {pipeline_mode = #tpu.pipeline_mode<synchronous>, transform_indices = @transform_2, window_bounds = array<i64: 1, 128>}, {pipeline_mode = #tpu.pipeline_mode<synchronous>, transform_indices = @transform_3, window_bounds = array<i64: 128, 128>}, {pipeline_mode = #tpu.pipeline_mode<synchronous>, transform_indices = @transform_4, window_bounds = array<i64: 1, 128>}, {transform_indices = @transform_5, window_bounds = array<i64: 16, 128>}]} {
    %c0 = arith.constant 0 : index
    %c0_0 = arith.constant 0 : index
    %0 = vector.load %arg1[%c0, %c0_0] : memref<16x128xf32, #tpu.memory_space<vmem>>, vector<16x128xf32>
    %c0_1 = arith.constant 0 : index
    %c0_2 = arith.constant 0 : index
    %1 = vector.load %arg2[%c0_1, %c0_2] : memref<128x128xf32, #tpu.memory_space<vmem>>, vector<128x128xf32>
    %cst = arith.constant dense<0.000000e+00> : vector<16x128xf32>
    %2 = tpu.matmul %0, %1, %cst {dimension_numbers = #tpu.dot_dimension_numbers<[1], [0], [0], [1], [0, 0, 1, 1], [], []>} : vector<16x128xf32>, vector<128x128xf32>, vector<16x128xf32> -> vector<16x128xf32>
    %c0_3 = arith.constant 0 : index
    %c0_4 = arith.constant 0 : index
    %3 = vector.load %arg3[%c0_3, %c0_4] : memref<1x128xf32, #tpu.memory_space<vmem>>, vector<1x128xf32>
    %4 = vector.broadcast %3 : vector<1x128xf32> to vector<16x128xf32>
    %5 = arith.addf %2, %4 : vector<16x128xf32>
    %cst_5 = arith.constant 0.000000e+00 : f32
    %6 = vector.broadcast %cst_5 : f32 to vector<16x128xf32>
    %7 = arith.maximumf %5, %6 : vector<16x128xf32>
    %c0_6 = arith.constant 0 : index
    %c0_7 = arith.constant 0 : index
    %8 = vector.load %arg4[%c0_6, %c0_7] : memref<128x128xf32, #tpu.memory_space<vmem>>, vector<128x128xf32>
    %cst_8 = arith.constant dense<0.000000e+00> : vector<16x128xf32>
    %9 = tpu.matmul %7, %8, %cst_8 {dimension_numbers = #tpu.dot_dimension_numbers<[1], [0], [0], [1], [0, 0, 1, 1], [], []>} : vector<16x128xf32>, vector<128x128xf32>, vector<16x128xf32> -> vector<16x128xf32>
    %c0_9 = arith.constant 0 : index
    %c0_10 = arith.constant 0 : index
    %10 = vector.load %arg5[%c0_9, %c0_10] : memref<1x128xf32, #tpu.memory_space<vmem>>, vector<1x128xf32>
    %11 = vector.broadcast %10 : vector<1x128xf32> to vector<16x128xf32>
    %12 = arith.addf %9, %11 : vector<16x128xf32>
    %cst_11 = arith.constant 0.000000e+00 : f32
    %13 = vector.broadcast %cst_11 : f32 to vector<16x128xf32>
    %14 = arith.maximumf %12, %13 : vector<16x128xf32>
    %c0_12 = arith.constant 0 : index
    %c0_13 = arith.constant 0 : index
    %15 = vector.load %arg6[%c0_12, %c0_13] : memref<16x128xf32, #tpu.memory_space<vmem>>, vector<16x128xf32>
    tpu.vector_store %arg6[%c0_12, %c0_13], %14 {strides = array<i32>} : memref<16x128xf32, #tpu.memory_space<vmem>>, vector<16x128xf32>,
    return
  }
  func.func @transform_0(%arg0: i32) -> (i32, i32) {
    %c0_i32 = arith.constant 0 : i32
    %c0_i32_0 = arith.constant 0 : i32
    return %arg0, %c0_i32 : i32, i32
  }
  func.func @transform_1(%arg0: i32) -> (i32, i32) {
    %c0_i32 = arith.constant 0 : i32
    %c0_i32_0 = arith.constant 0 : i32
    %c0_i32_1 = arith.constant 0 : i32
    return %c0_i32, %c0_i32_0 : i32, i32
  }
  func.func @transform_2(%arg0: i32) -> (i32, i32) {
    %c0_i32 = arith.constant 0 : i32
    %c0_i32_0 = arith.constant 0 : i32
    %c0_i32_1 = arith.constant 0 : i32
    return %c0_i32, %c0_i32_0 : i32, i32
  }
  func.func @transform_3(%arg0: i32) -> (i32, i32) {
    %c0_i32 = arith.constant 0 : i32
    %c0_i32_0 = arith.constant 0 : i32
    %c0_i32_1 = arith.constant 0 : i32
    return %c0_i32, %c0_i32_0 : i32, i32
  }
  func.func @transform_4(%arg0: i32) -> (i32, i32) {
    %c0_i32 = arith.constant 0 : i32
    %c0_i32_0 = arith.constant 0 : i32
    %c0_i32_1 = arith.constant 0 : i32
    return %c0_i32, %c0_i32_0 : i32, i32
  }
  func.func @transform_5(%arg0: i32) -> (i32, i32) {
    %c0_i32 = arith.constant 0 : i32
    %c0_i32_0 = arith.constant 0 : i32
    return %arg0, %c0_i32 : i32, i32
  }
}

</mosaic_0001>

<llo_original>
// kernel: item_tower_forward.1
$region0: #{item_tower_forward.1}
  #allocation0 [shape = 'u32[]', space=smem, size = 0x4, offset = 0x4, fixed_abs, tag = 'smem constant byte address 0x4 - core index']
  #allocation1 [shape = 'u32[144,128]{1,0:T(1,128)}', space=vmem, size = 0x12000, scoped, tag = 'internal scratch']
  %s0 = inlined_call_operand.vmem [shape: f32[16,128], index: 0, kind: input, shape index: {}]
  %s1 = inlined_call_operand.vmem [shape: f32[128,128], index: 1, kind: input, shape index: {}]
  %s2 = inlined_call_operand.vmem [shape: f32[1,128], index: 2, kind: input, shape index: {}]
  %s3 = inlined_call_operand.vmem [shape: f32[128,128], index: 3, kind: input, shape index: {}]
  %s4 = inlined_call_operand.vmem [shape: f32[1,128], index: 4, kind: input, shape index: {}]
  %s5 = inlined_call_operand.hbm [shape: f32[16,128], index: 5, kind: output, shape index: {}]
  %s6 = sld [smem:[#allocation0]]
  $region30: #{item_tower_forward.1} parent=0
    _
  %s8 = ssub.s32 1, %s6
  %s9 = scalar_select 0, %s8, %s6
  $region1: #{item_tower_forward.1} parent=0
    #allocation2 [shape = 'u8[8192]{0}', space=vmem, size = 0x2000, scoped, tag = 'output window, operand 0, single buffered']
    #allocation3 [shape = 's32[1]{0}', space=sflag, size = 0x4, scoped, tag = 'scoped memory for item_tower_forward.1']
    %10 = vsyncpa [#allocation3], 0
    // Predicated region
    $region2: #{item_tower_forward.1} parent=1 // pred_check
      _
    $region3: #{item_tower_forward.1} parent=1 // pred_check_branch
      %12 = sbr.rel (0) target = $region5
    $region4: #{item_tower_forward.1} parent=1 // pred_region
      _
    $region5: #{item_tower_forward.1} parent=1 // pred_fallthru
      _
    // Predicated region
    $region6: #{item_tower_forward.1} parent=1 // pred_check
      _
    $region7: #{item_tower_forward.1} parent=1 // pred_check_branch
      %14 = sbr.rel (0) target = $region9
    $region8: #{item_tower_forward.1} parent=1 // pred_region
      _
    $region9: #{item_tower_forward.1} parent=1 // pred_fallthru
      _
    // Predicated region
    $region10: #{item_tower_forward.1} parent=1 // pred_check
      _
    $region11: #{item_tower_forward.1} parent=1 // pred_check_branch
      %16 = sbr.rel (0) target = $region13
    $region12: #{item_tower_forward.1} parent=1 // pred_region
      _
    $region13: #{item_tower_forward.1} parent=1 // pred_fallthru
      _
    // Predicated region
    $region14: #{item_tower_forward.1} parent=1 // pred_check
      _
    $region15: #{item_tower_forward.1} parent=1 // pred_check_branch
      %18 = sbr.rel (0) target = $region17
    $region16: #{item_tower_forward.1} parent=1 // pred_region
      _
    $region17: #{item_tower_forward.1} parent=1 // pred_fallthru
      _
    // Predicated region
    $region18: #{item_tower_forward.1} parent=1 // pred_check
      _
    $region19: #{item_tower_forward.1} parent=1 // pred_check_branch
      %20 = sbr.rel (0) target = $region21
    $region20: #{item_tower_forward.1} parent=1 // pred_region
      _
    $region21: #{item_tower_forward.1} parent=1 // pred_fallthru
      _
    %v21 = vld [vmem:[%s0] sm:$0xff]
    %v22 = vld [vmem:[%s0 + $0x8] sm:$0xff]
    %v23 = vld [vmem:[%s1] sm:$0xff]
    %v24 = vld [vmem:[%s1 + $0x8] sm:$0xff]
    %v25 = vld [vmem:[%s1 + $0x10] sm:$0xff]
    %v26 = vld [vmem:[%s1 + $0x18] sm:$0xff]
    %v27 = vld [vmem:[%s1 + $0x20] sm:$0xff]
    %v28 = vld [vmem:[%s1 + $0x28] sm:$0xff]
    %v29 = vld [vmem:[%s1 + $0x30] sm:$0xff]
    %v30 = vld [vmem:[%s1 + $0x38] sm:$0xff]
    %v31 = vld [vmem:[%s1 + $0x40] sm:$0xff]
    %v32 = vld [vmem:[%s1 + $0x48] sm:$0xff]
    %v33 = vld [vmem:[%s1 + $0x50] sm:$0xff]
    %v34 = vld [vmem:[%s1 + $0x58] sm:$0xff]
    %v35 = vld [vmem:[%s1 + $0x60] sm:$0xff]
    %v36 = vld [vmem:[%s1 + $0x68] sm:$0xff]
    %v37 = vld [vmem:[%s1 + $0x70] sm:$0xff]
    %v38 = vld [vmem:[%s1 + $0x78] sm:$0xff]
    %v39 = vld [vmem:[%s2] sm:$0x1]
    %v41 = vlaneseq
    %v42 = vshrl.u32 %v41, 7
    %v43 = vsub.s32 0, %v42
    %v44 = vrot.slane %v39, %v43
    %46 = vmatprep.subr.mxu0 0.0
    %47 = vmatpush1.msra.mxu0 %v38
    %48 = vmatprep.subr.mxu0 0.0
    %49 = vmatpush1.msra.mxu0 %v37
    %50 = vmatprep.subr.mxu0 0.0
    %51 = vmatpush1.msra.mxu0 %v36
    %52 = vmatprep.subr.mxu0 0.0
    %53 = vmatpush1.msra.mxu0 %v35
    %54 = vmatprep.subr.mxu0 0.0
    %55 = vmatpush1.msra.mxu0 %v34
    %56 = vmatprep.subr.mxu0 0.0
    %57 = vmatpush1.msra.mxu0 %v33
    %58 = vmatprep.subr.mxu0 0.0
    %59 = vmatpush1.msra.mxu0 %v32
    %60 = vmatprep.subr.mxu0 0.0
    %61 = vmatpush1.msra.mxu0 %v31
    %62 = vmatprep.subr.mxu0 0.0
    %63 = vmatpush1.msra.mxu0 %v30
    %64 = vmatprep.subr.mxu0 0.0
    %65 = vmatpush1.msra.mxu0 %v29
    %66 = vmatprep.subr.mxu0 0.0
    %67 = vmatpush1.msra.mxu0 %v28
    %68 = vmatprep.subr.mxu0 0.0
    %69 = vmatpush1.msra.mxu0 %v27
    %70 = vmatprep.subr.mxu0 0.0
    %71 = vmatpush1.msra.mxu0 %v26
    %72 = vmatprep.subr.mxu0 0.0
    %73 = vmatpush1.msra.mxu0 %v25
    %74 = vmatprep.subr.mxu0 0.0
    %75 = vmatpush1.msra.mxu0 %v24
    %76 = vmatprep.subr.mxu0 0.0
    %77 = vmatpush1.msra.mxu0 %v23
    %78 = vmatprep.subr.mxu0 0.0
    %79 = vmatpush2.msra.mxu0 0.0
    %80 = vmatprep.subr.mxu0 0.0
    %81 = vmatpush2.msra.mxu0 0.0
    %82 = vmatprep.subr.mxu0 0.0
    %83 = vmatpush2.msra.mxu0 0.0
    %84 = vmatprep.subr.mxu0 0.0
    %85 = vmatpush2.msra.mxu0 0.0
    %86 = vmatprep.subr.mxu0 0.0
    %87 = vmatpush2.msra.mxu0 0.0
    %88 = vmatprep.subr.mxu0 0.0
    %89 = vmatpush2.msra.mxu0 0.0
    %90 = vmatprep.subr.mxu0 0.0
    %91 = vmatpush2.msra.mxu0 0.0
    %92 = vmatprep.subr.mxu0 0.0
    %93 = vmatpush2.msra.mxu0 0.0
    %94 = vmatprep.subr.mxu0 0.0
    %95 = vmatpush2.msra.mxu0 0.0
    %96 = vmatprep.subr.mxu0 0.0
    %97 = vmatpush2.msra.mxu0 0.0
    %98 = vmatprep.subr.mxu0 0.0
    %99 = vmatpush2.msra.mxu0 0.0
    %100 = vmatprep.subr.mxu0 0.0
    %101 = vmatpush2.msra.mxu0 0.0
    %102 = vmatprep.subr.mxu0 0.0
    %103 = vmatpush2.msra.mxu0 0.0
    %104 = vmatprep.subr.mxu0 0.0
    %105 = vmatpush2.msra.mxu0 0.0
    %106 = vmatprep.subr.mxu0 0.0
    %107 = vmatpush2.msra.mxu0 0.0
    %108 = vmatprep.subr.mxu0 0.0
    %109 = vmatpush2.msra.mxu0 0.0
    %110 = vmatprep.mubr.f32.mxu0 0.0
    %111 = vmatmul.mubr.f32.gmra.mxu0 %v21
    %v112 = vpop.f32.mrf.mxu0
    %v113 = vadd.f32 %v44, %v112
    %v114 = vpop.f32.mrf.mxu0
    %115 = vmatprep.mubr.f32.mxu0 0.0
    %116 = vmatmul.mubr.f32.gmra.mxu0 %v22
    %v117 = vpop.f32.mrf.mxu0
    %v118 = vadd.f32 %v44, %v117
    %v119 = vpop.f32.mrf.mxu0
    %120 = vdwg.mxu0
    %v121 = vmax.f32 %v113, 0.0
    %v122 = vmax.f32 %v118, 0.0
    %v123 = vld [vmem:[%s3] sm:$0xff]
    %v124 = vld [vmem:[%s3 + $0x8] sm:$0xff]
    %v125 = vld [vmem:[%s3 + $0x10] sm:$0xff]
    %v126 = vld [vmem:[%s3 + $0x18] sm:$0xff]
    %v127 = vld [vmem:[%s3 + $0x20] sm:$0xff]
    %v128 = vld [vmem:[%s3 + $0x28] sm:$0xff]
    %v129 = vld [vmem:[%s3 + $0x30] sm:$0xff]
    %v130 = vld [vmem:[%s3 + $0x38] sm:$0xff]
    %v131 = vld [vmem:[%s3 + $0x40] sm:$0xff]
    %v132 = vld [vmem:[%s3 + $0x48] sm:$0xff]
    %v133 = vld [vmem:[%s3 + $0x50] sm:$0xff]
    %v134 = vld [vmem:[%s3 + $0x58] sm:$0xff]
    %v135 = vld [vmem:[%s3 + $0x60] sm:$0xff]
    %v136 = vld [vmem:[%s3 + $0x68] sm:$0xff]
    %v137 = vld [vmem:[%s3 + $0x70] sm:$0xff]
    %v138 = vld [vmem:[%s3 + $0x78] sm:$0xff]
    %v139 = vld [vmem:[%s4] sm:$0x1]
    %v141 = vlaneseq
    %v142 = vshrl.u32 %v141, 7
    %v143 = vsub.s32 0, %v142
    %v144 = vrot.slane %v139, %v143
    %146 = vmatprep.subr.mxu0 0.0
    %147 = vmatpush1.msra.mxu0 %v138
    %148 = vmatprep.subr.mxu0 0.0
    %149 = vmatpush1.msra.mxu0 %v137
    %150 = vmatprep.subr.mxu0 0.0
    %151 = vmatpush1.msra.mxu0 %v136
    %152 = vmatprep.subr.mxu0 0.0
    %153 = vmatpush1.msra.mxu0 %v135
    %154 = vmatprep.subr.mxu0 0.0
    %155 = vmatpush1.msra.mxu0 %v134
    %156 = vmatprep.subr.mxu0 0.0
    %157 = vmatpush1.msra.mxu0 %v133
    %158 = vmatprep.subr.mxu0 0.0
    %159 = vmatpush1.msra.mxu0 %v132
    %160 = vmatprep.subr.mxu0 0.0
    %161 = vmatpush1.msra.mxu0 %v131
    %162 = vmatprep.subr.mxu0 0.0
    %163 = vmatpush1.msra.mxu0 %v130
    %164 = vmatprep.subr.mxu0 0.0
    %165 = vmatpush1.msra.mxu0 %v129
    %166 = vmatprep.subr.mxu0 0.0
    %167 = vmatpush1.msra.mxu0 %v128
    %168 = vmatprep.subr.mxu0 0.0
    %169 = vmatpush1.msra.mxu0 %v127
    %170 = vmatprep.subr.mxu0 0.0
    %171 = vmatpush1.msra.mxu0 %v126
    %172 = vmatprep.subr.mxu0 0.0
    %173 = vmatpush1.msra.mxu0 %v125
    %174 = vmatprep.subr.mxu0 0.0
    %175 = vmatpush1.msra.mxu0 %v124
    %176 = vmatprep.subr.mxu0 0.0
    %177 = vmatpush1.msra.mxu0 %v123
    %178 = vmatprep.subr.mxu0 0.0
    %179 = vmatpush2.msra.mxu0 0.0
    %180 = vmatprep.subr.mxu0 0.0
    %181 = vmatpush2.msra.mxu0 0.0
    %182 = vmatprep.subr.mxu0 0.0
    %183 = vmatpush2.msra.mxu0 0.0
    %184 = vmatprep.subr.mxu0 0.0
    %185 = vmatpush2.msra.mxu0 0.0
    %186 = vmatprep.subr.mxu0 0.0
    %187 = vmatpush2.msra.mxu0 0.0
    %188 = vmatprep.subr.mxu0 0.0
    %189 = vmatpush2.msra.mxu0 0.0
    %190 = vmatprep.subr.mxu0 0.0
    %191 = vmatpush2.msra.mxu0 0.0
    %192 = vmatprep.subr.mxu0 0.0
    %193 = vmatpush2.msra.mxu0 0.0
    %194 = vmatprep.subr.mxu0 0.0
    %195 = vmatpush2.msra.mxu0 0.0
    %196 = vmatprep.subr.mxu0 0.0
    %197 = vmatpush2.msra.mxu0 0.0
    %198 = vmatprep.subr.mxu0 0.0
    %199 = vmatpush2.msra.mxu0 0.0
    %200 = vmatprep.subr.mxu0 0.0
    %201 = vmatpush2.msra.mxu0 0.0
    %202 = vmatprep.subr.mxu0 0.0
    %203 = vmatpush2.msra.mxu0 0.0
    %204 = vmatprep.subr.mxu0 0.0
    %205 = vmatpush2.msra.mxu0 0.0
    %206 = vmatprep.subr.mxu0 0.0
    %207 = vmatpush2.msra.mxu0 0.0
    %208 = vmatprep.subr.mxu0 0.0
    %209 = vmatpush2.msra.mxu0 0.0
    %210 = vmatprep.mubr.f32.mxu0 0.0
    %211 = vmatmul.mubr.f32.gmra.mxu0 %v121
    %v212 = vpop.f32.mrf.mxu0
    %v213 = vadd.f32 %v144, %v212
    %v214 = vpop.f32.mrf.mxu0
    %215 = vmatprep.mubr.f32.mxu0 0.0
    %216 = vmatmul.mubr.f32.gmra.mxu0 %v122
    %v217 = vpop.f32.mrf.mxu0
    %v218 = vadd.f32 %v144, %v217
    %v219 = vpop.f32.mrf.mxu0
    %220 = vdwg.mxu0
    %v221 = vmax.f32 %v213, 0.0
    %v222 = vmax.f32 %v218, 0.0
    %223 = vst [vmem:[#allocation2] sm:$0xff] %v221
    %224 = vst [vmem:[#allocation2 + $0x8] sm:$0xff] %v222
    // Predicated region
    $region22: #{item_tower_forward.1} parent=1 // pred_check
      _
    $region23: #{item_tower_forward.1} parent=1 // pred_check_branch
      %226 = sbr.rel (0) target = $region25
    $region24: #{item_tower_forward.1} parent=1 // pred_region
      %s228 = ssub.s32 256, 256
      %229 = vsyncadd [#allocation3], %s228
      %s230 = sshll.u32 [#allocation2], 4
      %s231 = int_to_ptr.vmem [resolvable:$true] %s230
      %236 = dma.vmem_to_hbm [thread:$0]  %s231, 256, %s5, [#allocation3], 128, 128, 8
    $region25: #{item_tower_forward.1} parent=1 // pred_fallthru
      _
    // Predicated region
    $region26: #{item_tower_forward.1} parent=1 // pred_check
      _
    $region27: #{item_tower_forward.1} parent=1 // pred_check_branch
      %238 = sbr.rel (0) target = $region29
    $region28: #{item_tower_forward.1} parent=1 // pred_region
      %239 = dma.done [#allocation3], 256
    $region29: #{item_tower_forward.1} parent=1 // pred_fallthru
      _
    %240 = vsyncpa [#allocation3], 1

</llo_original>
